<compile_context>
chip_gen: v7x
topology: tpu7x:2x2x1
jax: 0.10.0
libtpu: 0.0.40
codegen_flags: <defaults>
</compile_context>

<pallas_src>
import functools

import jax
import jax.numpy as jnp
from jax.experimental import pallas as pl
from jax.experimental.pallas import tpu as pltpu


# ---------------------------------------------------------------------------
# Chip detection (block sizing is gated per TPU generation).
# ---------------------------------------------------------------------------
def _chip_info():
    """Returns (vmem_capacity_bytes, device_kind_lower, is_two_tensorcore_chip)."""
    kind = ""
    try:
        kind = jax.devices()[0].device_kind.lower()
    except Exception:
        pass
    two_tc = "v7" in kind
    vmem_cap = None
    try:
        vmem_cap = int(pltpu.get_tpu_info().vmem_capacity_bytes)
    except Exception:
        vmem_cap = None
    if not vmem_cap or vmem_cap <= 0:
        vmem_cap = (64 << 20) if two_tc else (128 << 20)
    return vmem_cap, kind, two_tc


# ---------------------------------------------------------------------------
# Kernels.
# ---------------------------------------------------------------------------
def _sigmoid_fwd_kernel(x_ref, o_ref, *, compute_dtype):
    x = x_ref[...].astype(compute_dtype)
    half = jnp.asarray(0.5, compute_dtype)
    # sigmoid(x) = 0.5*tanh(x/2) + 0.5: single EUP push, saturates cleanly to
    # 0/1 for large |x| (no inf*0 -> NaN path of the exp + vrcp + Newton form).
    o_ref[...] = (half * jnp.tanh(x * half) + half).astype(o_ref.dtype)


def _sigmoid_bwd_kernel(s_ref, g_ref, o_ref, *, compute_dtype):
    # Fused s * (1 - s) * g -> single HBM pass instead of recompute + 2 XLA ops.
    s = s_ref[...].astype(compute_dtype)
    g = g_ref[...].astype(compute_dtype)
    one = jnp.asarray(1.0, compute_dtype)
    o_ref[...] = (s * (one - s) * g).astype(o_ref.dtype)


# ---------------------------------------------------------------------------
# Tiling plan for a flat, 128-aligned elementwise slab.
# ---------------------------------------------------------------------------
def _plan_tiling(total, itemsize, block_bytes, min_blocks, sub):
    """Pick (lanes, rows, row_tile). `total` is a positive multiple of 128."""
    widths = (8192, 4096, 2048, 1024, 512, 256, 128)
    nbytes = total * itemsize
    # Only insist on multiple grid steps when the array is big enough that
    # DMA/compute overlap matters; tiny arrays take one block (lowest overhead).
    want_multi = nbytes >= (512 << 10)

    lanes = None
    if want_multi:
        # Widest lane count that still leaves enough rows for >= min_blocks
        # tiles (pipelining overlap; keeps both v7x TensorCores busy).
        for w in widths:
            if total % w == 0 and total // w >= min_blocks * sub:
                lanes = w
                break
    if lanes is None:
        for w in widths:
            if total % w == 0 and total // w >= sub:
                lanes = w
                break
    if lanes is None:
        for w in widths:
            if total % w == 0:
                lanes = w
                break

    rows = total // lanes
    if rows <= sub:
        return lanes, rows, rows                 # one full-array block

    tr = max(sub, (block_bytes // (lanes * itemsize)) // sub * sub)
    tr = min(tr, rows)
    if want_multi and rows >= min_blocks * sub:
        # Guarantee at least min_blocks grid steps (sublane-aligned tiles).
        tr = min(tr, max(sub, (rows // min_blocks) // sub * sub))
    return lanes, rows, tr


# ---------------------------------------------------------------------------
# Generic elementwise driver.
# ---------------------------------------------------------------------------
def _elementwise_pallas(kernel, ref_fn, out_dtype, arrays, *,
                        flops_per_elem=1, transcendentals_per_elem=0):
    """Run an elementwise kernel over same-shaped inputs via a lane-dense slab."""
    shape = arrays[0].shape
    total = int(arrays[0].size)
    out_dtype = jnp.dtype(out_dtype)

    vmem_cap, kind, two_tc = _chip_info()

    in_dtype = jnp.result_type(*[a.dtype for a in arrays])
    # bf16-native compute where the VPU/EUP support it (v6e/v7x); f32 on v5e.
    if (jnp.issubdtype(in_dtype, jnp.floating)
            and jnp.dtype(in_dtype).itemsize < 4
            and "v5" not in kind):
        compute_dtype = in_dtype
    else:
        compute_dtype = jnp.float32
    kern = functools.partial(kernel, compute_dtype=compute_dtype)

    aligned = (total // 128) * 128
    if aligned == 0:
        # Tiny (<128 elements): not worth a kernel launch.
        return ref_fn(*arrays).astype(out_dtype)

    itemsize = max([jnp.dtype(a.dtype).itemsize for a in arrays]
                   + [out_dtype.itemsize])
    n_bufs = len(arrays) + 1                      # inputs + output
    headroom = 16 << 20                           # Mosaic internal scratch etc.
    # 8 MiB blocks on 128 MiB-VMEM chips (v5e/v6e), 4 MiB on v7x (64 MiB/TC);
    # always capped by what the double-buffered plan can actually afford.
    block_bytes = (8 << 20) if vmem_cap >= (128 << 20) else (4 << 20)
    block_bytes = min(block_bytes,
                      max(1 << 20, (vmem_cap - headroom) // (2 * n_bufs)))

    sub = max(8, 32 // jnp.dtype(in_dtype).itemsize)  # 8 for f32, 16 for bf16
    min_blocks = 4 if two_tc else 2                   # 2 TCs on v7x
    lanes, rows, tr = _plan_tiling(aligned, itemsize, block_bytes,
                                   min_blocks, sub)

    # Scoped-VMEM limit derived from the actual double-buffered block plan.
    per_block = tr * lanes * itemsize
    vmem_limit = int(min(vmem_cap,
                         max(32 << 20, 2 * n_bufs * per_block + (8 << 20))))

    flats = [jnp.ravel(a) for a in arrays]
    if aligned == total:
        slabs = [f.reshape(rows, lanes) for f in flats]       # zero-copy
    else:
        slabs = [f[:aligned].reshape(rows, lanes) for f in flats]

    bytes_accessed = (sum(jnp.dtype(a.dtype).itemsize for a in arrays) * aligned
                      + out_dtype.itemsize * aligned)

    out2d = pl.pallas_call(
        kern,
        out_shape=jax.ShapeDtypeStruct((rows, lanes), out_dtype),
        grid_spec=pltpu.PrefetchScalarGridSpec(
            num_scalar_prefetch=0,
            grid=(pl.cdiv(rows, tr),),        # ragged last row-block is masked
            in_specs=[pl.BlockSpec((tr, lanes), lambda i: (i, 0))
                      for _ in slabs],
            out_specs=pl.BlockSpec((tr, lanes), lambda i: (i, 0)),
        ),
        compiler_params=pltpu.CompilerParams(
            dimension_semantics=("parallel",),
            vmem_limit_bytes=vmem_limit,
        ),
        cost_estimate=pl.CostEstimate(
            flops=flops_per_elem * aligned,
            transcendentals=transcendentals_per_elem * aligned,
            bytes_accessed=bytes_accessed,
        ),
    )(*slabs)

    out_flat = out2d.reshape(-1)
    if aligned != total:
        # <128-element tail computed with plain jnp (no full-array pad/unpad).
        tail = ref_fn(*[f[aligned:] for f in flats]).astype(out_dtype)
        out_flat = jnp.concatenate([out_flat, tail])
    return out_flat.reshape(shape)


# ---------------------------------------------------------------------------
# Public ops.
# ---------------------------------------------------------------------------
def sigmoid_pallas(x):
    """Elementwise sigmoid matching torch.Tensor.sigmoid()."""
    return _elementwise_pallas(
        _sigmoid_fwd_kernel, jax.nn.sigmoid, x.dtype, (x,),
        flops_per_elem=3, transcendentals_per_elem=1)


def sigmoid_grad_pallas(s, g):
    """Fused backward: s * (1 - s) * g in one kernel."""
    return _elementwise_pallas(
        _sigmoid_bwd_kernel, lambda s_, g_: s_ * (1.0 - s_) * g_, g.dtype,
        (s, g), flops_per_elem=3, transcendentals_per_elem=0)


class Sigmoid:
    """JAX/Pallas mirror of the PyTorch Sigmoid Module."""

    def __init__(self):
        self.input = None
        self.output = None

    def forward(self, x):
        self.input = x
        self.output = sigmoid_pallas(x)
        return self.output

    def backward(self, gradwrtoutput):
        # Mathematically identical to sigmoid(input)*(1-sigmoid(input))*g,
        # but reuses the saved forward output and fuses everything in one kernel.
        return sigmoid_grad_pallas(self.output, gradwrtoutput)


if __name__ == "__main__":
    key = jax.random.PRNGKey(0)
    # NCHW-like input: batch=2, channels=4, spatial=16x16
    x = jax.random.normal(key, (2, 4, 16, 16), dtype=jnp.float32)

    layer = Sigmoid()
    y = jax.block_until_ready(layer.forward(x))

    ref = jax.nn.sigmoid(x)
    assert y.shape == x.shape and y.dtype == x.dtype
    assert jnp.max(jnp.abs(y - ref)) < 1e-5
    assert bool(jnp.all(jnp.isfinite(y)))

    g = jax.random.normal(jax.random.PRNGKey(1), x.shape, dtype=jnp.float32)
    dx = jax.block_until_ready(layer.backward(g))
    ref_dx = ref * (1.0 - ref) * g
    assert dx.shape == x.shape
    assert jnp.max(jnp.abs(dx - ref_dx)) < 1e-5

    print("KERNEL_OK")
</pallas_src>

<mosaic_0001>
module attributes {stable_mosaic.version = 11 : i64} {
  func.func @_sigmoid_fwd_kernel(%arg0: i32, %arg1: memref<8x256xf32, #tpu.memory_space<vmem>>, %arg2: memref<8x256xf32, #tpu.memory_space<vmem>>) attributes {dimension_semantics = [#tpu.dimension_semantics<parallel>], iteration_bounds = array<i64: 1>, scalar_prefetch = 0 : i64, scratch_operands = 0 : i64, tpu.core_type = #tpu.core_type<tc>, window_params = [{transform_indices = @transform_0, window_bounds = array<i64: 8, 256>}, {transform_indices = @transform_1, window_bounds = array<i64: 8, 256>}]} {
    %c0 = arith.constant 0 : index
    %c0_0 = arith.constant 0 : index
    %0 = vector.load %arg1[%c0, %c0_0] : memref<8x256xf32, #tpu.memory_space<vmem>>, vector<8x256xf32>
    %cst = arith.constant 5.000000e-01 : f32
    %1 = vector.broadcast %cst : f32 to vector<8x256xf32>
    %2 = arith.mulf %0, %1 : vector<8x256xf32>
    %3 = math.tanh %2 : vector<8x256xf32>
    %cst_1 = arith.constant 5.000000e-01 : f32
    %4 = vector.broadcast %cst_1 : f32 to vector<8x256xf32>
    %5 = arith.mulf %4, %3 : vector<8x256xf32>
    %cst_2 = arith.constant 5.000000e-01 : f32
    %6 = vector.broadcast %cst_2 : f32 to vector<8x256xf32>
    %7 = arith.addf %5, %6 : vector<8x256xf32>
    %c0_3 = arith.constant 0 : index
    %c0_4 = arith.constant 0 : index
    %8 = vector.load %arg2[%c0_3, %c0_4] : memref<8x256xf32, #tpu.memory_space<vmem>>, vector<8x256xf32>
    tpu.vector_store %arg2[%c0_3, %c0_4], %7 {strides = array<i32>} : memref<8x256xf32, #tpu.memory_space<vmem>>, vector<8x256xf32>,
    return
  }
  func.func @transform_0(%arg0: i32) -> (i32, i32) {
    %c0_i32 = arith.constant 0 : i32
    %c0_i32_0 = arith.constant 0 : i32
    return %arg0, %c0_i32 : i32, i32
  }
  func.func @transform_1(%arg0: i32) -> (i32, i32) {
    %c0_i32 = arith.constant 0 : i32
    %c0_i32_0 = arith.constant 0 : i32
    return %arg0, %c0_i32 : i32, i32
  }
}

</mosaic_0001>

<llo_original>
// kernel: tpu_custom_call.1
$region0: #{tpu_custom_call.1}
  #allocation0 [shape = 'u32[]', space=smem, size = 0x4, offset = 0x4, fixed_abs, tag = 'smem constant byte address 0x4 - core index']
  #allocation1 [shape = 'u32[144,128]{1,0:T(1,128)}', space=vmem, size = 0x12000, scoped, tag = 'internal scratch']
  %s0 = inlined_call_operand.hbm [shape: f32[8,256], index: 0, kind: input, shape index: {}]
  %s1 = inlined_call_operand.hbm [shape: f32[8,256], index: 1, kind: output, shape index: {}]
  %s2 = sld [smem:[#allocation0]]
  $region18: #{tpu_custom_call.1} parent=0
    _
  %s4 = ssub.s32 1, %s2
  %s5 = scalar_select 0, %s4, %s2
  $region1: #{tpu_custom_call.1} parent=0
    #allocation2 [shape = 'u8[8192]{0}', space=vmem, size = 0x2000, scoped, tag = 'input window, operand 0, single buffered']
    #allocation3 [shape = 's32[1]{0}', space=sflag, size = 0x4, scoped, tag = 'scoped memory for tpu_custom_call.1']
    #allocation4 [shape = 's32[1]{0}', space=sflag, size = 0x4, scoped, tag = 'scoped memory for tpu_custom_call.1']
    #allocation5 [shape = 'u8[8192]{0}', space=vmem, size = 0x2000, scoped, tag = 'output window, operand 0, single buffered']
    %6 = vsyncpa [#allocation3], 0
    %7 = vsyncpa [#allocation4], 0
    // Predicated region
    $region2: #{tpu_custom_call.1} parent=1 // pred_check
      _
    $region3: #{tpu_custom_call.1} parent=1 // pred_check_branch
      %9 = sbr.rel (0) target = $region5
    $region4: #{tpu_custom_call.1} parent=1 // pred_region
      %s11 = ssub.s32 256, 256
      %12 = vsyncadd [#allocation3], %s11
      %s14 = sshll.u32 [#allocation2], 4
      %s15 = int_to_ptr.vmem [resolvable:$true] %s14
      %17 = dma.hbm_to_vmem [thread:$0]  %s0, 256, %s15, [#allocation3]
    $region5: #{tpu_custom_call.1} parent=1 // pred_fallthru
      _
    // Predicated region
    $region6: #{tpu_custom_call.1} parent=1 // pred_check
      _
    $region7: #{tpu_custom_call.1} parent=1 // pred_check_branch
      %19 = sbr.rel (0) target = $region9
    $region8: #{tpu_custom_call.1} parent=1 // pred_region
      %20 = dma.done [#allocation3], 256
    $region9: #{tpu_custom_call.1} parent=1 // pred_fallthru
      _
    %v21 = vld [vmem:[#allocation2] sm:$0xff]
    %v22 = vld [vmem:[#allocation2 + $0x8] sm:$0xff]
    %v23 = vmul.f32 %v21, 0.5
    %v24 = vmul.f32 %v22, 0.5
    %v25 = vtanh.pop %v23
    %v26 = vtanh.pop %v24
    %v27 = vmul.f32 %v25, 0.5
    %v28 = vmul.f32 %v26, 0.5
    %v29 = vadd.f32 %v27, 0.5
    %v30 = vadd.f32 %v28, 0.5
    %31 = vst [vmem:[#allocation5] sm:$0xff] %v29
    %32 = vst [vmem:[#allocation5 + $0x8] sm:$0xff] %v30
    // Predicated region
    $region10: #{tpu_custom_call.1} parent=1 // pred_check
      _
    $region11: #{tpu_custom_call.1} parent=1 // pred_check_branch
      %34 = sbr.rel (0) target = $region13
    $region12: #{tpu_custom_call.1} parent=1 // pred_region
      %s36 = ssub.s32 256, 256
      %37 = vsyncadd [#allocation4], %s36
      %s39 = sshll.u32 [#allocation5], 4
      %s40 = int_to_ptr.vmem [resolvable:$true] %s39
      %42 = dma.vmem_to_hbm [thread:$0]  %s40, 256, %s1, [#allocation4]
    $region13: #{tpu_custom_call.1} parent=1 // pred_fallthru
      _
    // Predicated region
    $region14: #{tpu_custom_call.1} parent=1 // pred_check
      _
    $region15: #{tpu_custom_call.1} parent=1 // pred_check_branch
      %44 = sbr.rel (0) target = $region17
    $region16: #{tpu_custom_call.1} parent=1 // pred_region
      %45 = dma.done [#allocation4], 256
    $region17: #{tpu_custom_call.1} parent=1 // pred_fallthru
      _
    %46 = vsyncpa [#allocation3], 1
    %47 = vsyncpa [#allocation4], 1

</llo_original>
